<compile_context>
chip_gen: v7x
topology: tpu7x:2x2x1
jax: 0.10.0
libtpu: 0.0.40
codegen_flags: <defaults>
</compile_context>

<pallas_src>
import jax
import jax.numpy as jnp
from jax.experimental import pallas as pl
from jax.experimental.pallas import tpu as pltpu


_VMEM_BYTES_PER_BUFFER = 2 * 1024 * 1024   # ~2 MiB/buffer: safe on v5e's 16 MiB scoped VMEM
_PALLAS_MIN_BYTES = 4 * 1024 * 1024        # below this the kernel is pure launch overhead
_MAX_LANE_TILE = 4096                      # lane-tile cap (elements)


def _copy_kernel(x_ref, o_ref):
    # Identical in/out blocks; lane/sublane-dense copy (no size-1 axis here).
    o_ref[...] = x_ref[...]


def _sublane_base(dtype):
    return {4: 8, 2: 16, 1: 32}.get(jnp.dtype(dtype).itemsize, 8)


def _largest_divisor_multiple(n, base, cap):
    """Largest multiple of `base` that divides n and is <= cap (0 if none)."""
    best = 0
    k = base
    limit = min(n, cap)
    while k <= limit:
        if n % k == 0:
            best = k
        k += base
    return best


def _flatten_contiguous(x):
    """Reshape x into a contiguous 2-D (rows, L) view with a lane-dense minor dim."""
    n = x.size
    L = _largest_divisor_multiple(n, 128, _MAX_LANE_TILE)
    if L:
        return x.reshape(n // L, L)
    # Fallback: (leading, last-dim) layout; ragged edges are masked by Pallas
    # (correctness only — perf fallback for shapes with no 128-factor).
    if x.ndim == 0:
        return x.reshape(1, 1)
    if x.ndim == 1:
        return x.reshape(1, x.shape[0])
    lead = 1
    for d in x.shape[:-1]:
        lead *= d
    return x.reshape(lead, x.shape[-1])


def _pallas_copy_2d(x2d):
    """Tiled, lane-dense identity copy of a 2-D array through VMEM."""
    R, T = x2d.shape
    itemsize = jnp.dtype(x2d.dtype).itemsize
    sub = _sublane_base(x2d.dtype)

    # Minor (lane) tile: full extent when it fits (always legal, single
    # contiguous DMA stream); otherwise the largest dividing 128-multiple;
    # otherwise a ragged 1024 fallback (masked edges, correctness fine).
    if T <= _MAX_LANE_TILE:
        tt = T
    else:
        tt = _largest_divisor_multiple(T, 128, _MAX_LANE_TILE) or 1024

    # Major (sublane) tile: exact divisor, multiple of the sublane base,
    # bounded by the ~2 MiB/buffer VMEM budget.
    budget_rows = max(sub, _VMEM_BYTES_PER_BUFFER // max(1, tt * itemsize))
    if R <= budget_rows:
        tr = R
    else:
        tr = _largest_divisor_multiple(R, sub, budget_rows)
        if tr == 0:
            tr = min(R, max(sub, (budget_rows // sub) * sub))  # ragged fallback

    # v7x: guarantee >=2 blocks on a parallel axis when the copy is big enough
    # to matter so both TensorCores drive DMA.  (With the 2 MiB/buffer cap this
    # is effectively unreachable; kept as a cheap defensive branch.)
    total_bytes = R * T * itemsize
    if total_bytes > 2 * 1024 * 1024 and pl.cdiv(R, tr) == 1 and pl.cdiv(T, tt) == 1:
        half = (R // 2 // sub) * sub
        if half >= sub:
            tr = half

    grid = (pl.cdiv(R, tr), pl.cdiv(T, tt))

    return pl.pallas_call(
        _copy_kernel,
        out_shape=jax.ShapeDtypeStruct((R, T), x2d.dtype),
        grid=grid,
        in_specs=[pl.BlockSpec((tr, tt), lambda i, j: (i, j))],
        out_specs=pl.BlockSpec((tr, tt), lambda i, j: (i, j)),
        compiler_params=pltpu.CompilerParams(
            dimension_semantics=("parallel", "parallel"),
        ),
        cost_estimate=pl.CostEstimate(
            flops=0,
            transcendentals=0,
            bytes_accessed=2 * R * T * itemsize,
        ),
    )(x2d)


def reshape_module_forward(x, dim: int = 2, use_pallas=None):
    """Equivalent of ReshapeModule(dim).forward(x) == torch.unsqueeze(x, dim).

    use_pallas=None (default): size-gated — metadata-only jnp.expand_dims for
    small arrays (the truly optimal path), Pallas lane-dense copy only when
    the array is large enough that the copy runs near the HBM roofline.
    use_pallas=True/False forces the respective path.
    """
    nbytes = x.size * jnp.dtype(x.dtype).itemsize
    if use_pallas is None:
        use_pallas = nbytes >= _PALLAS_MIN_BYTES
    if not use_pallas or x.size == 0:
        return jnp.expand_dims(x, axis=dim)

    orig_shape = x.shape
    x2d = _flatten_contiguous(x)
    y2d = _pallas_copy_2d(x2d)
    # Free metadata ops: restore original shape, then unsqueeze at `dim`.
    return jnp.expand_dims(y2d.reshape(orig_shape), axis=dim)


if __name__ == "__main__":
    key = jax.random.PRNGKey(0)

    # Small shape consistent with the module's SEANet usage: (batch, C, T).
    # Default path -> size-gated to the zero-cost metadata reshape.
    B, C, T = 2, 4, 16
    x_small = jax.random.normal(key, (B, C, T), dtype=jnp.float32)
    out_small = jax.block_until_ready(reshape_module_forward(x_small, dim=2))
    ref_small = jnp.expand_dims(x_small, axis=2)
    assert out_small.shape == (B, C, 1, T), out_small.shape
    assert out_small.dtype == x_small.dtype
    assert bool(jnp.array_equal(out_small, ref_small))

    # Force the Pallas kernel on the same small shape (full-extent 1x128 block).
    out_small_pl = jax.block_until_ready(
        reshape_module_forward(x_small, dim=2, use_pallas=True))
    assert out_small_pl.shape == (B, C, 1, T), out_small_pl.shape
    assert bool(jnp.array_equal(out_small_pl, ref_small))

    # Modest shape that exercises the tiled Pallas path: flattened to
    # (256, 4096) f32 -> (128, 4096) blocks (2 MiB/buffer), 2x1 parallel grid.
    key2 = jax.random.PRNGKey(0)
    B2, C2, T2 = 2, 256, 2048
    x_big = jax.random.normal(key2, (B2, C2, T2), dtype=jnp.float32)
    out_big = jax.block_until_ready(
        reshape_module_forward(x_big, dim=2, use_pallas=True))
    ref_big = jnp.expand_dims(x_big, axis=2)
    assert out_big.shape == (B2, C2, 1, T2), out_big.shape
    assert bool(jnp.array_equal(out_big, ref_big))

    print("KERNEL_OK")
</pallas_src>

<mosaic_0001>
module attributes {stable_mosaic.version = 11 : i64} {
  func.func @_copy_kernel(%arg0: i32, %arg1: i32, %arg2: memref<1x128xf32, #tpu.memory_space<vmem>>, %arg3: memref<1x128xf32, #tpu.memory_space<vmem>>) attributes {dimension_semantics = [#tpu.dimension_semantics<parallel>, #tpu.dimension_semantics<parallel>], iteration_bounds = array<i64: 1, 1>, scalar_prefetch = 0 : i64, scratch_operands = 0 : i64, tpu.core_type = #tpu.core_type<tc>, window_params = [{transform_indices = @transform_0, window_bounds = array<i64: 1, 128>}, {transform_indices = @transform_1, window_bounds = array<i64: 1, 128>}]} {
    %c0 = arith.constant 0 : index
    %c0_0 = arith.constant 0 : index
    %0 = vector.load %arg2[%c0, %c0_0] : memref<1x128xf32, #tpu.memory_space<vmem>>, vector<1x128xf32>
    %c0_1 = arith.constant 0 : index
    %c0_2 = arith.constant 0 : index
    %1 = vector.load %arg3[%c0_1, %c0_2] : memref<1x128xf32, #tpu.memory_space<vmem>>, vector<1x128xf32>
    tpu.vector_store %arg3[%c0_1, %c0_2], %0 {strides = array<i32>} : memref<1x128xf32, #tpu.memory_space<vmem>>, vector<1x128xf32>,
    return
  }
  func.func @transform_0(%arg0: i32, %arg1: i32) -> (i32, i32) {
    %c0_i32 = arith.constant 0 : i32
    return %arg0, %arg1 : i32, i32
  }
  func.func @transform_1(%arg0: i32, %arg1: i32) -> (i32, i32) {
    %c0_i32 = arith.constant 0 : i32
    return %arg0, %arg1 : i32, i32
  }
}

</mosaic_0001>

<llo_original>
// kernel: tpu_custom_call.1
$region0: #{tpu_custom_call.1}
  #allocation0 [shape = 'u32[]', space=smem, size = 0x4, offset = 0x4, fixed_abs, tag = 'smem constant byte address 0x4 - core index']
  #allocation1 [shape = 'u32[144,128]{1,0:T(1,128)}', space=vmem, size = 0x12000, scoped, tag = 'internal scratch']
  %s0 = inlined_call_operand.hbm [shape: f32[1,128], index: 0, kind: input, shape index: {}]
  %s1 = inlined_call_operand.hbm [shape: f32[1,128], index: 1, kind: output, shape index: {}]
  %s2 = sld [smem:[#allocation0]]
  $region18: #{tpu_custom_call.1} parent=0
    _
  %s4 = ssub.s32 1, %s2
  %s5 = scalar_select 0, %s4, %s2
  $region1: #{tpu_custom_call.1} parent=0
    #allocation2 [shape = 'u8[512]{0}', space=vmem, size = 0x400, scoped, tag = 'input window, operand 0, single buffered']
    #allocation3 [shape = 's32[1]{0}', space=sflag, size = 0x4, scoped, tag = 'scoped memory for tpu_custom_call.1']
    #allocation4 [shape = 's32[1]{0}', space=sflag, size = 0x4, scoped, tag = 'scoped memory for tpu_custom_call.1']
    #allocation5 [shape = 'u8[512]{0}', space=vmem, size = 0x400, scoped, tag = 'output window, operand 0, single buffered']
    %6 = vsyncpa [#allocation3], 0
    %7 = vsyncpa [#allocation4], 0
    // Predicated region
    $region2: #{tpu_custom_call.1} parent=1 // pred_check
      _
    $region3: #{tpu_custom_call.1} parent=1 // pred_check_branch
      %9 = sbr.rel (0) target = $region5
    $region4: #{tpu_custom_call.1} parent=1 // pred_region
      %s11 = ssub.s32 16, 16
      %12 = vsyncadd [#allocation3], %s11
      %s14 = sshll.u32 [#allocation2], 4
      %s15 = int_to_ptr.vmem [resolvable:$true] %s14
      %17 = dma.hbm_to_vmem [thread:$0]  %s0, 16, %s15, [#allocation3]
    $region5: #{tpu_custom_call.1} parent=1 // pred_fallthru
      _
    // Predicated region
    $region6: #{tpu_custom_call.1} parent=1 // pred_check
      _
    $region7: #{tpu_custom_call.1} parent=1 // pred_check_branch
      %19 = sbr.rel (0) target = $region9
    $region8: #{tpu_custom_call.1} parent=1 // pred_region
      %20 = dma.done [#allocation3], 16
    $region9: #{tpu_custom_call.1} parent=1 // pred_fallthru
      _
    %v21 = vld [vmem:[#allocation2] sm:$0x1]
    %22 = vst [vmem:[#allocation5] sm:$0x1] %v21
    // Predicated region
    $region10: #{tpu_custom_call.1} parent=1 // pred_check
      _
    $region11: #{tpu_custom_call.1} parent=1 // pred_check_branch
      %24 = sbr.rel (0) target = $region13
    $region12: #{tpu_custom_call.1} parent=1 // pred_region
      %s26 = ssub.s32 16, 16
      %27 = vsyncadd [#allocation4], %s26
      %s29 = sshll.u32 [#allocation5], 4
      %s30 = int_to_ptr.vmem [resolvable:$true] %s29
      %32 = dma.vmem_to_hbm [thread:$0]  %s30, 16, %s1, [#allocation4]
    $region13: #{tpu_custom_call.1} parent=1 // pred_fallthru
      _
    // Predicated region
    $region14: #{tpu_custom_call.1} parent=1 // pred_check
      _
    $region15: #{tpu_custom_call.1} parent=1 // pred_check_branch
      %34 = sbr.rel (0) target = $region17
    $region16: #{tpu_custom_call.1} parent=1 // pred_region
      %35 = dma.done [#allocation4], 16
    $region17: #{tpu_custom_call.1} parent=1 // pred_fallthru
      _
    %36 = vsyncpa [#allocation3], 1
    %37 = vsyncpa [#allocation4], 1

</llo_original>
